<compile_context>
chip_gen: v6e
topology: v6e:2x2x1
jax: 0.10.0
libtpu: 0.0.40
codegen_flags: <defaults>
</compile_context>

<pallas_src>
import functools

import jax
import jax.numpy as jnp
import numpy as np
from jax.experimental import pallas as pl
from jax.experimental.pallas import tpu as pltpu


# ---------------------------------------------------------------------------
# Static tables to unfold conv1 (and the 2x2 pool window) into a (288, 64)
# dense weight matrix.  Row r = q*72 + c*9 + p with
#   q = a*2 + b   : element of the 2x2 max-pool window
#   c             : conv1 output channel (0..7)
#   p = i*3 + j   : pooled-map position == conv2 tap (0..8)
# Column = py*8 + px (input pixel).  W1BIG[r, py*8+px] = kern1[c,0,ky,kx]
# when (py, px) = (2i+a+ky, 2j+b+kx), else 0.
# ---------------------------------------------------------------------------
def _build_unfold_tables():
    rows, cols, cidx, kidx = [], [], [], []
    for q in range(4):
        a, b = q // 2, q % 2
        for c in range(8):
            for p in range(9):
                i, j = p // 3, p % 3
                r = q * 72 + c * 9 + p
                for k in range(9):
                    ky, kx = k // 3, k % 3
                    py, px = 2 * i + a + ky, 2 * j + b + kx
                    rows.append(r)
                    cols.append(py * 8 + px)
                    cidx.append(c)
                    kidx.append(k)
    return (np.array(rows), np.array(cols), np.array(cidx), np.array(kidx))


_ROWS, _COLS, _CIDX, _KIDX = _build_unfold_tables()


def digits_convnet_kernel(x_ref, w1_ref, b1_ref, w2_ref, b2_ref,
                          fcw_ref, fcb_ref, out_ref):
    # x_ref: (64, TN) bf16 (pixel-major, batch on lanes); w1_ref: (288, 64) bf16.
    # conv1 for all 36 output positions x 8 channels in one MXU matmul.
    h1 = jnp.dot(w1_ref[...], x_ref[...],
                 preferred_element_type=jnp.float32)            # (288, TN) f32
    # 2x2 max-pool: rows are pool-window-major, so this is an elementwise max
    # of four contiguous (72, TN) slabs (pure VPU, no gathers).
    pooled = jnp.maximum(jnp.maximum(h1[0:72], h1[72:144]),
                         jnp.maximum(h1[144:216], h1[216:288]))  # (72, TN)
    # conv1 bias + ReLU hoisted past the max (exact by monotonicity).
    pooled = jnp.maximum(pooled + b1_ref[...], 0.0)
    # conv2 fused over (channels x taps): one (4,72)@(72,TN) dot.
    h2 = jnp.dot(w2_ref[...], pooled,
                 preferred_element_type=jnp.float32) + b2_ref[...]
    h2 = jnp.maximum(h2, 0.0)                                    # (4, TN)
    # fc1: (10,4)@(4,TN); lane-dense (10, TN) store.
    out_ref[...] = (jnp.dot(fcw_ref[...], h2,
                            preferred_element_type=jnp.float32) + fcb_ref[...])


def _round_up(v, m):
    return (v + m - 1) // m * m


@functools.partial(jax.jit, static_argnames=("tile_n",))
def digits_convnet_forward(x, kern1, bias1, kern2, bias2, fc_weight, fc_bias,
                           tile_n=None):
    x = x.astype(jnp.float32)
    if x.ndim == 4:                      # mirror torch's NCHW unsqueeze handling
        x = x[:, 0]
    n = x.shape[0]

    if tile_n is None:
        tile_n = min(2048, _round_up(n, 128))   # lane-aligned, VMEM-safe tile
    n_pad = _round_up(n, tile_n)

    # Feature-major, batch-on-lanes input stream, bf16 (glue: one layout pass).
    xf = jnp.pad(x.reshape(n, 64), ((0, n_pad - n), (0, 0)))
    xt = xf.astype(jnp.bfloat16).T                               # (64, n_pad)

    # Parameter re-layouts (tiny, resident in VMEM across the whole grid).
    w1flat = kern1.reshape(8, 9).astype(jnp.float32)             # (c, ky*3+kx)
    w1big = (jnp.zeros((288, 64), jnp.float32)
             .at[_ROWS, _COLS].set(w1flat[_CIDX, _KIDX])
             .astype(jnp.bfloat16))                              # unfolded conv1
    b1r = jnp.repeat(bias1.astype(jnp.float32), 9).reshape(72, 1)
    w2 = kern2.reshape(4, 72).astype(jnp.float32)                # (cout, cin*9+tap)
    b2r = bias2.astype(jnp.float32).reshape(4, 1)
    fcw = fc_weight.astype(jnp.float32)                          # (10, 4)
    fcb = fc_bias.astype(jnp.float32).reshape(10, 1)

    const = lambda i: (0, 0)
    out = pl.pallas_call(
        digits_convnet_kernel,
        out_shape=jax.ShapeDtypeStruct((10, n_pad), jnp.float32),
        grid=(n_pad // tile_n,),
        in_specs=[
            pl.BlockSpec((64, tile_n), lambda i: (0, i)),        # image tile
            pl.BlockSpec((288, 64), const),                      # unfolded conv1 w
            pl.BlockSpec((72, 1), const),                        # conv1 bias
            pl.BlockSpec((4, 72), const),                        # conv2 w
            pl.BlockSpec((4, 1), const),                         # conv2 bias
            pl.BlockSpec((10, 4), const),                        # fc w
            pl.BlockSpec((10, 1), const),                        # fc bias
        ],
        out_specs=pl.BlockSpec((10, tile_n), lambda i: (0, i)),
        compiler_params=pltpu.CompilerParams(
            dimension_semantics=("parallel",)),
    )(xt, w1big, b1r, w2, b2r, fcw, fcb)

    return out.T[:n]                                             # (N, 10)


def reference_forward(x, kern1, bias1, kern2, bias2, fc_weight, fc_bias):
    # Plain-JAX reference matching torch semantics (NCHW, valid conv, pool 2).
    # The image and conv1 weights are rounded to bf16 to mirror the kernel's
    # mixed-precision input stream; all accumulation is f32 in both paths.
    xb = x.astype(jnp.bfloat16).astype(jnp.float32)[:, None]
    k1 = kern1.astype(jnp.bfloat16).astype(jnp.float32)
    dn = ('NCHW', 'OIHW', 'NCHW')
    y = jax.lax.conv_general_dilated(xb, k1, (1, 1), 'VALID', dimension_numbers=dn)
    y = jax.nn.relu(y + bias1[None, :, None, None])
    y = jax.lax.reduce_window(y, -jnp.inf, jax.lax.max,
                              (1, 1, 2, 2), (1, 1, 2, 2), 'VALID')
    y = jax.lax.conv_general_dilated(y, kern2.astype(jnp.float32), (1, 1), 'VALID',
                                     dimension_numbers=dn)
    y = jax.nn.relu(y + bias2[None, :, None, None])
    y = y.reshape(y.shape[0], 4)
    return y @ fc_weight.T + fc_bias


if __name__ == "__main__":
    key = jax.random.PRNGKey(0)
    k = jax.random.split(key, 7)
    N = 300                      # exercises batch padding (300 -> 384) and a 3-step grid
    # digits-style input: (N, 8, 8), values in [0, 16)
    x = jax.random.uniform(k[0], (N, 8, 8), jnp.float32) * 16.0
    kern1 = jax.random.normal(k[1], (8, 1, 3, 3), jnp.float32) * 0.3
    bias1 = jax.random.normal(k[2], (8,), jnp.float32) * 0.1
    kern2 = jax.random.normal(k[3], (4, 8, 3, 3), jnp.float32) * 0.3
    bias2 = jax.random.normal(k[4], (4,), jnp.float32) * 0.1
    fc_w = jax.random.normal(k[5], (10, 4), jnp.float32) * 0.3
    fc_b = jax.random.normal(k[6], (10,), jnp.float32) * 0.1

    out = digits_convnet_forward(x, kern1, bias1, kern2, bias2, fc_w, fc_b,
                                 tile_n=128)
    out = jax.block_until_ready(out)
    assert out.shape == (N, 10)

    ref = reference_forward(x, kern1, bias1, kern2, bias2, fc_w, fc_b)
    np.testing.assert_allclose(np.asarray(out), np.asarray(ref),
                               rtol=1e-3, atol=1e-3)
    print("KERNEL_OK")
</pallas_src>

<mosaic_0001>
module attributes {stable_mosaic.version = 11 : i64} {
  func.func @digits_convnet_kernel(%arg0: i32, %arg1: memref<64x128xbf16, #tpu.memory_space<vmem>>, %arg2: memref<288x64xbf16, #tpu.memory_space<vmem>>, %arg3: memref<72x1xf32, #tpu.memory_space<vmem>>, %arg4: memref<4x72xf32, #tpu.memory_space<vmem>>, %arg5: memref<4x1xf32, #tpu.memory_space<vmem>>, %arg6: memref<10x4xf32, #tpu.memory_space<vmem>>, %arg7: memref<10x1xf32, #tpu.memory_space<vmem>>, %arg8: memref<10x128xf32, #tpu.memory_space<vmem>>) attributes {dimension_semantics = [#tpu.dimension_semantics<parallel>], iteration_bounds = array<i64: 3>, scalar_prefetch = 0 : i64, scratch_operands = 0 : i64, tpu.core_type = #tpu.core_type<tc>, window_params = [{transform_indices = @transform_0, window_bounds = array<i64: 64, 128>}, {pipeline_mode = #tpu.pipeline_mode<synchronous>, transform_indices = @transform_1, window_bounds = array<i64: 288, 64>}, {pipeline_mode = #tpu.pipeline_mode<synchronous>, transform_indices = @transform_2, window_bounds = array<i64: 72, 1>}, {pipeline_mode = #tpu.pipeline_mode<synchronous>, transform_indices = @transform_3, window_bounds = array<i64: 4, 72>}, {pipeline_mode = #tpu.pipeline_mode<synchronous>, transform_indices = @transform_4, window_bounds = array<i64: 4, 1>}, {pipeline_mode = #tpu.pipeline_mode<synchronous>, transform_indices = @transform_5, window_bounds = array<i64: 10, 4>}, {pipeline_mode = #tpu.pipeline_mode<synchronous>, transform_indices = @transform_6, window_bounds = array<i64: 10, 1>}, {transform_indices = @transform_7, window_bounds = array<i64: 10, 128>}]} {
    %c0 = arith.constant 0 : index
    %c0_0 = arith.constant 0 : index
    %0 = vector.load %arg2[%c0, %c0_0] : memref<288x64xbf16, #tpu.memory_space<vmem>>, vector<288x64xbf16>
    %c0_1 = arith.constant 0 : index
    %c0_2 = arith.constant 0 : index
    %1 = vector.load %arg1[%c0_1, %c0_2] : memref<64x128xbf16, #tpu.memory_space<vmem>>, vector<64x128xbf16>
    %cst = arith.constant dense<0.000000e+00> : vector<288x128xf32>
    %2 = tpu.matmul %0, %1, %cst {dimension_numbers = #tpu.dot_dimension_numbers<[1], [0], [0], [1], [0, 0, 1, 1], [], []>} : vector<288x64xbf16>, vector<64x128xbf16>, vector<288x128xf32> -> vector<288x128xf32>
    %3 = vector.extract_strided_slice %2 {offsets = [0, 0], sizes = [72, 128], strides = [1, 1]} : vector<288x128xf32> to vector<72x128xf32>
    %4 = vector.extract_strided_slice %2 {offsets = [72, 0], sizes = [72, 128], strides = [1, 1]} : vector<288x128xf32> to vector<72x128xf32>
    %5 = arith.maximumf %3, %4 : vector<72x128xf32>
    %6 = vector.extract_strided_slice %2 {offsets = [144, 0], sizes = [72, 128], strides = [1, 1]} : vector<288x128xf32> to vector<72x128xf32>
    %7 = vector.extract_strided_slice %2 {offsets = [216, 0], sizes = [72, 128], strides = [1, 1]} : vector<288x128xf32> to vector<72x128xf32>
    %8 = arith.maximumf %6, %7 : vector<72x128xf32>
    %9 = arith.maximumf %5, %8 : vector<72x128xf32>
    %c0_3 = arith.constant 0 : index
    %c0_4 = arith.constant 0 : index
    %10 = vector.load %arg3[%c0_3, %c0_4] : memref<72x1xf32, #tpu.memory_space<vmem>>, vector<72x1xf32>
    %11 = vector.broadcast %10 : vector<72x1xf32> to vector<72x128xf32>
    %12 = arith.addf %9, %11 : vector<72x128xf32>
    %cst_5 = arith.constant 0.000000e+00 : f32
    %13 = vector.broadcast %cst_5 : f32 to vector<72x128xf32>
    %14 = arith.maximumf %12, %13 : vector<72x128xf32>
    %c0_6 = arith.constant 0 : index
    %c0_7 = arith.constant 0 : index
    %15 = vector.load %arg4[%c0_6, %c0_7] : memref<4x72xf32, #tpu.memory_space<vmem>>, vector<4x72xf32>
    %cst_8 = arith.constant dense<0.000000e+00> : vector<4x128xf32>
    %16 = tpu.matmul %15, %14, %cst_8 {dimension_numbers = #tpu.dot_dimension_numbers<[1], [0], [0], [1], [0, 0, 1, 1], [], []>} : vector<4x72xf32>, vector<72x128xf32>, vector<4x128xf32> -> vector<4x128xf32>
    %c0_9 = arith.constant 0 : index
    %c0_10 = arith.constant 0 : index
    %17 = vector.load %arg5[%c0_9, %c0_10] : memref<4x1xf32, #tpu.memory_space<vmem>>, vector<4x1xf32>
    %18 = vector.broadcast %17 : vector<4x1xf32> to vector<4x128xf32>
    %19 = arith.addf %16, %18 : vector<4x128xf32>
    %cst_11 = arith.constant 0.000000e+00 : f32
    %20 = vector.broadcast %cst_11 : f32 to vector<4x128xf32>
    %21 = arith.maximumf %19, %20 : vector<4x128xf32>
    %c0_12 = arith.constant 0 : index
    %c0_13 = arith.constant 0 : index
    %22 = vector.load %arg6[%c0_12, %c0_13] : memref<10x4xf32, #tpu.memory_space<vmem>>, vector<10x4xf32>
    %cst_14 = arith.constant dense<0.000000e+00> : vector<10x128xf32>
    %23 = tpu.matmul %22, %21, %cst_14 {dimension_numbers = #tpu.dot_dimension_numbers<[1], [0], [0], [1], [0, 0, 1, 1], [], []>} : vector<10x4xf32>, vector<4x128xf32>, vector<10x128xf32> -> vector<10x128xf32>
    %c0_15 = arith.constant 0 : index
    %c0_16 = arith.constant 0 : index
    %24 = vector.load %arg7[%c0_15, %c0_16] : memref<10x1xf32, #tpu.memory_space<vmem>>, vector<10x1xf32>
    %25 = vector.broadcast %24 : vector<10x1xf32> to vector<10x128xf32>
    %26 = arith.addf %23, %25 : vector<10x128xf32>
    %c0_17 = arith.constant 0 : index
    %c0_18 = arith.constant 0 : index
    %27 = vector.load %arg8[%c0_17, %c0_18] : memref<10x128xf32, #tpu.memory_space<vmem>>, vector<10x128xf32>
    tpu.vector_store %arg8[%c0_17, %c0_18], %26 {strides = array<i32>} : memref<10x128xf32, #tpu.memory_space<vmem>>, vector<10x128xf32>,
    return
  }
  func.func @transform_0(%arg0: i32) -> (i32, i32) {
    %c0_i32 = arith.constant 0 : i32
    %c0_i32_0 = arith.constant 0 : i32
    return %c0_i32, %arg0 : i32, i32
  }
  func.func @transform_1(%arg0: i32) -> (i32, i32) {
    %c0_i32 = arith.constant 0 : i32
    %c0_i32_0 = arith.constant 0 : i32
    %c0_i32_1 = arith.constant 0 : i32
    return %c0_i32, %c0_i32_0 : i32, i32
  }
  func.func @transform_2(%arg0: i32) -> (i32, i32) {
    %c0_i32 = arith.constant 0 : i32
    %c0_i32_0 = arith.constant 0 : i32
    %c0_i32_1 = arith.constant 0 : i32
    return %c0_i32, %c0_i32_0 : i32, i32
  }
  func.func @transform_3(%arg0: i32) -> (i32, i32) {
    %c0_i32 = arith.constant 0 : i32
    %c0_i32_0 = arith.constant 0 : i32
    %c0_i32_1 = arith.constant 0 : i32
    return %c0_i32, %c0_i32_0 : i32, i32
  }
  func.func @transform_4(%arg0: i32) -> (i32, i32) {
    %c0_i32 = arith.constant 0 : i32
    %c0_i32_0 = arith.constant 0 : i32
    %c0_i32_1 = arith.constant 0 : i32
    return %c0_i32, %c0_i32_0 : i32, i32
  }
  func.func @transform_5(%arg0: i32) -> (i32, i32) {
    %c0_i32 = arith.constant 0 : i32
    %c0_i32_0 = arith.constant 0 : i32
    %c0_i32_1 = arith.constant 0 : i32
    return %c0_i32, %c0_i32_0 : i32, i32
  }
  func.func @transform_6(%arg0: i32) -> (i32, i32) {
    %c0_i32 = arith.constant 0 : i32
    %c0_i32_0 = arith.constant 0 : i32
    %c0_i32_1 = arith.constant 0 : i32
    return %c0_i32, %c0_i32_0 : i32, i32
  }
  func.func @transform_7(%arg0: i32) -> (i32, i32) {
    %c0_i32 = arith.constant 0 : i32
    %c0_i32_0 = arith.constant 0 : i32
    return %c0_i32, %arg0 : i32, i32
  }
}

</mosaic_0001>

<llo_original>
// kernel: digits_convnet_forward.1
$region0: #{digits_convnet_forward.1}
  #allocation0 [shape = 'u32[]', space=smem, size = 0x4, offset = 0x4, fixed_abs, tag = 'smem constant byte address 0x4 - core index']
  #allocation1 [shape = 'u32[144,128]{1,0:T(1,128)}', space=vmem, size = 0x12000, scoped, tag = 'internal scratch']
  %s0 = inlined_call_operand.vmem [shape: bf16[64,384], index: 0, kind: input, shape index: {}]
  %s1 = inlined_call_operand.vmem [shape: bf16[288,64], index: 1, kind: input, shape index: {}]
  %s2 = inlined_call_operand.vmem [shape: f32[72,1], index: 2, kind: input, shape index: {}]
  %s3 = inlined_call_operand.vmem [shape: f32[4,72], index: 3, kind: input, shape index: {}]
  %s4 = inlined_call_operand.vmem [shape: f32[4,1], index: 4, kind: input, shape index: {}]
  %s5 = inlined_call_operand.vmem [shape: f32[10,4], index: 5, kind: input, shape index: {}]
  %s6 = inlined_call_operand.vmem [shape: f32[10,1], index: 6, kind: input, shape index: {}]
  %s7 = inlined_call_operand.hbm [shape: f32[10,384], index: 7, kind: output, shape index: {}]
  %s8 = sld [smem:[#allocation0]]
  $region102: #{digits_convnet_forward.1} parent=0
    _
  %s10 = ssub.s32 1, %s8
  %s11 = scalar_select 0, %s10, %s8
  $region1: #{digits_convnet_forward.1} parent=0
    #allocation2 [shape = 'u8[32768]{0}', space=vmem, size = 0x8000, scoped, tag = 'input window, operand 0']
    #allocation3 [shape = 'u8[16384]{0}', space=vmem, size = 0x4000, scoped, tag = 'output window, operand 0']
    #allocation4 [shape = 's32[2]{0}', space=sflag, size = 0x8, scoped, tag = 'scoped memory for digits_convnet_forward.1']
    %12 = vsyncpa [#allocation4], 0
    %s13 = scalar_lea.sflag [#allocation4], 1
    %14 = vsyncpa %s13, 0
    loop: start=0, step=1, limit=5
    $region2: #{digits_convnet_forward.1} parent=1 // loop_pre_header
      _
    $region3: #{digits_convnet_forward.1} parent=1 // loop_header
      %s16 = sphi 0, %s20
      %p17 = scmp.ge.s32.totalorder %s16, 5
      %s26 = sphi 0, %s28
      %s29 = sphi 0, %s26
      %s30 = sphi 0, %s29
      %s46 = sphi 0, %s30
      %s50 = sphi 0, %s50
      %s52 = sphi 0, %s50
      %s53 = sphi 0, %s52
      %s67 = sphi 0, %s53
      %s71 = sphi 0, %s71
      %s73 = sphi 0, %s71
      %s74 = sphi 0, %s73
      %s88 = sphi 0, %s74
      %s92 = sphi 0, %s92
      %s94 = sphi 0, %s92
      %s95 = sphi 0, %s94
      %s109 = sphi 0, %s95
      %s113 = sphi 0, %s113
      %s115 = sphi 0, %s113
      %s116 = sphi 0, %s115
      %s130 = sphi 0, %s116
      %s134 = sphi 0, %s134
      %s136 = sphi 0, %s134
      %s137 = sphi 0, %s136
      %s151 = sphi 0, %s137
      %s155 = sphi 0, %s155
      %s157 = sphi 0, %s155
      %s158 = sphi 0, %s157
      %s172 = sphi 0, %s158
      %s178 = sphi 0, %s180
      %s181 = sphi 0, %s178
      %s182 = sphi 0, %s181
      %s198 = sphi 0, %s182
    $region4: #{digits_convnet_forward.1} parent=1 // loop_header_branch
      %19 = sbr.rel (%p17) target = $region8
    $region5: #{digits_convnet_forward.1} parent=1 // loop_body
      %s21 = ssub.s32 %s16, 1
      %s22 = ssub.s32 %s16, 2
      %s23 = sadd.s32 %s16, 1
      %s24 = ssub.s32 %s16, %s23
      %p25 = scmp.eq.s32.totalorder %s24, 0
      %s27 = sadd.s32 %s26, 1
      %s28 = scalar_select %p25, %s26, %s27
      %p31 = pneg %p25
      %p32 = scmp.eq.s32.totalorder %s16, 2
      %p33 = por %p31, %p32
      %p34 = scmp.ne.s32.totalorder %s26, %s29
      %p35 = scmp.eq.s32.totalorder %s16, 0
      %p36 = por %p34, %p35
      %p37 = scmp.ne.s32.totalorder %s26, %s29
      %p38 = scmp.eq.s32.totalorder %s21, 2
      %p39 = por %p37, %p38
      %p40 = scmp.ne.s32.totalorder %s29, %s30
      %p41 = scmp.eq.s32.totalorder %s21, 0
      %p42 = por %p40, %p41
      %p43 = scmp.ne.s32.totalorder %s29, %s30
      %p44 = scmp.eq.s32.totalorder %s22, 2
      %p45 = por %p43, %p44
      %p47 = scmp.ne.s32.totalorder %s30, %s46
      %p48 = scmp.eq.s32.totalorder %s22, 0
      %p49 = por %p47, %p48
      %s51 = sadd.s32 %s50, 1
      %p54 = scmp.eq.s32.totalorder %s16, 2
      %p55 = scmp.ne.s32.totalorder %s50, %s52
      %p56 = scmp.eq.s32.totalorder %s16, 0
      %p57 = por %p55, %p56
      %p58 = scmp.ne.s32.totalorder %s50, %s52
      %p59 = scmp.eq.s32.totalorder %s21, 2
      %p60 = por %p58, %p59
      %p61 = scmp.ne.s32.totalorder %s52, %s53
      %p62 = scmp.eq.s32.totalorder %s21, 0
      %p63 = por %p61, %p62
      %p64 = scmp.ne.s32.totalorder %s52, %s53
      %p65 = scmp.eq.s32.totalorder %s22, 2
      %p66 = por %p64, %p65
      %p68 = scmp.ne.s32.totalorder %s53, %s67
      %p69 = scmp.eq.s32.totalorder %s22, 0
      %p70 = por %p68, %p69
      %s72 = sadd.s32 %s71, 1
      %p75 = scmp.eq.s32.totalorder %s16, 2
      %p76 = scmp.ne.s32.totalorder %s71, %s73
      %p77 = scmp.eq.s32.totalorder %s16, 0
      %p78 = por %p76, %p77
      %p79 = scmp.ne.s32.totalorder %s71, %s73
      %p80 = scmp.eq.s32.totalorder %s21, 2
      %p81 = por %p79, %p80
      %p82 = scmp.ne.s32.totalorder %s73, %s74
      %p83 = scmp.eq.s32.totalorder %s21, 0
      %p84 = por %p82, %p83
      %p85 = scmp.ne.s32.totalorder %s73, %s74
      %p86 = scmp.eq.s32.totalorder %s22, 2
      %p87 = por %p85, %p86
      %p89 = scmp.ne.s32.totalorder %s74, %s88
      %p90 = scmp.eq.s32.totalorder %s22, 0
      %p91 = por %p89, %p90
      %s93 = sadd.s32 %s92, 1
      %p96 = scmp.eq.s32.totalorder %s16, 2
      %p97 = scmp.ne.s32.totalorder %s92, %s94
      %p98 = scmp.eq.s32.totalorder %s16, 0
      %p99 = por %p97, %p98
      %p100 = scmp.ne.s32.totalorder %s92, %s94
      %p101 = scmp.eq.s32.totalorder %s21, 2
      %p102 = por %p100, %p101
      %p103 = scmp.ne.s32.totalorder %s94, %s95
      %p104 = scmp.eq.s32.totalorder %s21, 0
      %p105 = por %p103, %p104
      %p106 = scmp.ne.s32.totalorder %s94, %s95
      %p107 = scmp.eq.s32.totalorder %s22, 2
      %p108 = por %p106, %p107
      %p110 = scmp.ne.s32.totalorder %s95, %s109
      %p111 = scmp.eq.s32.totalorder %s22, 0
      %p112 = por %p110, %p111
      %s114 = sadd.s32 %s113, 1
      %p117 = scmp.eq.s32.totalorder %s16, 2
      %p118 = scmp.ne.s32.totalorder %s113, %s115
      %p119 = scmp.eq.s32.totalorder %s16, 0
      %p120 = por %p118, %p119
      %p121 = scmp.ne.s32.totalorder %s113, %s115
      %p122 = scmp.eq.s32.totalorder %s21, 2
      %p123 = por %p121, %p122
      %p124 = scmp.ne.s32.totalorder %s115, %s116
      %p125 = scmp.eq.s32.totalorder %s21, 0
      %p126 = por %p124, %p125
      %p127 = scmp.ne.s32.totalorder %s115, %s116
      %p128 = scmp.eq.s32.totalorder %s22, 2
      %p129 = por %p127, %p128
      %p131 = scmp.ne.s32.totalorder %s116, %s130
      %p132 = scmp.eq.s32.totalorder %s22, 0
      %p133 = por %p131, %p132
      %s135 = sadd.s32 %s134, 1
      %p138 = scmp.eq.s32.totalorder %s16, 2
      %p139 = scmp.ne.s32.totalorder %s134, %s136
      %p140 = scmp.eq.s32.totalorder %s16, 0
      %p141 = por %p139, %p140
      %p142 = scmp.ne.s32.totalorder %s134, %s136
      %p143 = scmp.eq.s32.totalorder %s21, 2
      %p144 = por %p142, %p143
      %p145 = scmp.ne.s32.totalorder %s136, %s137
      %p146 = scmp.eq.s32.totalorder %s21, 0
      %p147 = por %p145, %p146
      %p148 = scmp.ne.s32.totalorder %s136, %s137
      %p149 = scmp.eq.s32.totalorder %s22, 2
      %p150 = por %p148, %p149
      %p152 = scmp.ne.s32.totalorder %s137, %s151
      %p153 = scmp.eq.s32.totalorder %s22, 0
      %p154 = por %p152, %p153
      %s156 = sadd.s32 %s155, 1
      %p159 = scmp.eq.s32.totalorder %s16, 2
      %p160 = scmp.ne.s32.totalorder %s155, %s157
      %p161 = scmp.eq.s32.totalorder %s16, 0
      %p162 = por %p160, %p161
      %p163 = scmp.ne.s32.totalorder %s155, %s157
      %p164 = scmp.eq.s32.totalorder %s21, 2
      %p165 = por %p163, %p164
      %p166 = scmp.ne.s32.totalorder %s157, %s158
      %p167 = scmp.eq.s32.totalorder %s21, 0
      %p168 = por %p166, %p167
      %p169 = scmp.ne.s32.totalorder %s157, %s158
      %p170 = scmp.eq.s32.totalorder %s22, 2
      %p171 = por %p169, %p170
      %p173 = scmp.ne.s32.totalorder %s158, %s172
      %p174 = scmp.eq.s32.totalorder %s22, 0
      %p175 = por %p173, %p174
      %s176 = ssub.s32 %s16, %s23
      %p177 = scmp.eq.s32.totalorder %s176, 0
      %s179 = sadd.s32 %s178, 1
      %s180 = scalar_select %p177, %s178, %s179
      %p183 = pneg %p177
      %p184 = scmp.eq.s32.totalorder %s16, 2
      %p185 = por %p183, %p184
      %p186 = scmp.ne.s32.totalorder %s178, %s181
      %p187 = scmp.eq.s32.totalorder %s16, 0
      %p188 = por %p186, %p187
      %p189 = scmp.ne.s32.totalorder %s178, %s181
      %p190 = scmp.eq.s32.totalorder %s21, 2
      %p191 = por %p189, %p190
      %p192 = scmp.ne.s32.totalorder %s181, %s182
      %p193 = scmp.eq.s32.totalorder %s21, 0
      %p194 = por %p192, %p193
      %p195 = scmp.ne.s32.totalorder %s181, %s182
      %p196 = scmp.eq.s32.totalorder %s22, 2
      %p197 = por %p195, %p196
      %p199 = scmp.ne.s32.totalorder %s182, %s198
      %p200 = scmp.eq.s32.totalorder %s22, 0
      %p201 = por %p199, %p200
      %p202 = scmp.le.s32.totalorder 1, %s16
      %p203 = scmp.lt.s32.totalorder %s16, 4
      %p204 = pnand %p202, %p203
      %p205 = pneg %p204
      // Predicated region
      $region9: #{digits_convnet_forward.1} parent=5 // pred_check
        _
      $region10: #{digits_convnet_forward.1} parent=5 // pred_check_branch
        %207 = sbr.rel (%p204) target = $region12
      $region11: #{digits_convnet_forward.1} parent=5 // pred_region
        %s208 = ssub.s32 %s16, 1
        // Predicated region
        $region13: #{digits_convnet_forward.1} parent=11 // pred_check
          %p209 = pneg %p63
        $region14: #{digits_convnet_forward.1} parent=11 // pred_check_branch
          %211 = sbr.rel (%p209) target = $region16
        $region15: #{digits_convnet_forward.1} parent=11 // pred_region
          _
        $region16: #{digits_convnet_forward.1} parent=11 // pred_fallthru
          _
        // Predicated region
        $region17: #{digits_convnet_forward.1} parent=11 // pred_check
          %p212 = pneg %p84
        $region18: #{digits_convnet_forward.1} parent=11 // pred_check_branch
          %214 = sbr.rel (%p212) target = $region20
        $region19: #{digits_convnet_forward.1} parent=11 // pred_region
          _
        $region20: #{digits_convnet_forward.1} parent=11 // pred_fallthru
          _
        // Predicated region
        $region21: #{digits_convnet_forward.1} parent=11 // pred_check
          %p215 = pneg %p105
        $region22: #{digits_convnet_forward.1} parent=11 // pred_check_branch
          %217 = sbr.rel (%p215) target = $region24
        $region23: #{digits_convnet_forward.1} parent=11 // pred_region
          _
        $region24: #{digits_convnet_forward.1} parent=11 // pred_fallthru
          _
        // Predicated region
        $region25: #{digits_convnet_forward.1} parent=11 // pred_check
          %p218 = pneg %p126
        $region26: #{digits_convnet_forward.1} parent=11 // pred_check_branch
          %220 = sbr.rel (%p218) target = $region28
        $region27: #{digits_convnet_forward.1} parent=11 // pred_region
          _
        $region28: #{digits_convnet_forward.1} parent=11 // pred_fallthru
          _
        // Predicated region
        $region29: #{digits_convnet_forward.1} parent=11 // pred_check
          %p221 = pneg %p147
        $region30: #{digits_convnet_forward.1} parent=11 // pred_check_branch
          %223 = sbr.rel (%p221) target = $region32
        $region31: #{digits_convnet_forward.1} parent=11 // pred_region
          _
        $region32: #{digits_convnet_forward.1} parent=11 // pred_fallthru
          _
        // Predicated region
        $region33: #{digits_convnet_forward.1} parent=11 // pred_check
          %p224 = pneg %p168
        $region34: #{digits_convnet_forward.1} parent=11 // pred_check_branch
          %226 = sbr.rel (%p224) target = $region36
        $region35: #{digits_convnet_forward.1} parent=11 // pred_region
          _
        $region36: #{digits_convnet_forward.1} parent=11 // pred_fallthru
          _
      $region12: #{digits_convnet_forward.1} parent=5 // pred_fallthru
        _
      %p227 = scmp.lt.s32.totalorder %s16, 3
      // Predicated region
      $region37: #{digits_convnet_forward.1} parent=5 // pred_check
        %p228 = pneg %p227
      $region38: #{digits_convnet_forward.1} parent=5 // pred_check_branch
        %230 = sbr.rel (%p228) target = $region40
      $region39: #{digits_convnet_forward.1} parent=5 // pred_region
        // Predicated region
        $region41: #{digits_convnet_forward.1} parent=39 // pred_check
          %p231 = pneg %p36
        $region42: #{digits_convnet_forward.1} parent=39 // pred_check_branch
          %233 = sbr.rel (%p231) target = $region44
        $region43: #{digits_convnet_forward.1} parent=39 // pred_region
          %s234 = sand.u32 %s26, 1
          %s235 = sand.u32 %s26, 1
          %s236 = smul.addr %s235, 32
          %s237 = scalar_lea.vmem [#allocation2], %s236
          %s238 = smul.addr %s16, 4
          %s239 = scalar_lea.vmem %s0, %s238
          // Predicated region
          $region45: #{digits_convnet_forward.1} parent=43 // pred_check
            _
          $region46: #{digits_convnet_forward.1} parent=43 // pred_check_branch
            %241 = sbr.rel (0) target = $region48
          $region47: #{digits_convnet_forward.1} parent=43 // pred_region
            // Predicated region
            $region49: #{digits_convnet_forward.1} parent=47 // pred_check
              _
            $region50: #{digits_convnet_forward.1} parent=47 // pred_check_branch
              %243 = sbr.rel target = $region52
            $region51: #{digits_convnet_forward.1} parent=47 // pred_region
              // Predicated region
              $region64: #{digits_convnet_forward.1} parent=51 // pred_check
                _
              $region65: #{digits_convnet_forward.1} parent=51 // pred_check_branch
                %273 = sbr.rel (0) target = $region67
              $region66: #{digits_convnet_forward.1} parent=51 // pred_region
                loop: start=0, step=1, limit=1
                $region68: #{digits_convnet_forward.1} parent=66 // loop_pre_header
                  _
                $region69: #{digits_convnet_forward.1} parent=66 // loop_header
                  %s275 = sphi 0, %s279
                  %p276 = scmp.ge.s32.totalorder %s275, 1
                  %s280 = sphi %s239, %s239
                  %s281 = sphi %s237, %s237
                $region70: #{digits_convnet_forward.1} parent=66 // loop_header_branch
                  %278 = sbr.rel (%p276) target = $region74
                $region71: #{digits_convnet_forward.1} parent=66 // loop_body
                  _
                $region72: #{digits_convnet_forward.1} parent=66 // loop_footer
                  %s279 = sadd.s32 1, %s275
                $region73: #{digits_convnet_forward.1} parent=66 // loop_footer_branch
                  %274 = sbr.rel target = $region69
                $region74: #{digits_convnet_forward.1} parent=66 // loop_exit
                  _
                %s283 = ssub.s32 16, 1
                loop: start=0, step=1, limit=1
                $region75: #{digits_convnet_forward.1} parent=66 // loop_pre_header
                  _
                $region76: #{digits_convnet_forward.1} parent=66 // loop_header
                  %s285 = sphi 0, %s289
                  %p286 = scmp.ge.s32.totalorder %s285, 1
                  %s290 = sphi %s239, %s239
                  %s291 = sphi %s237, %s237
                $region77: #{digits_convnet_forward.1} parent=66 // loop_header_branch
                  %288 = sbr.rel (%p286) target = $region81
                $region78: #{digits_convnet_forward.1} parent=66 // loop_body
                  %v292 = vld [vmem:[%s290] sm:%s283]
                  %293 = vst [vmem:[%s291] sm:%s283] %v292
                  %v294 = vld [vmem:[%s290 + $0xc] sm:%s283]
                  %295 = vst [vmem:[%s291 + $0x4] sm:%s283] %v294
                  %v296 = vld [vmem:[%s290 + $0x18] sm:%s283]
                  %297 = vst [vmem:[%s291 + $0x8] sm:%s283] %v296
                  %v298 = vld [vmem:[%s290 + $0x24] sm:%s283]
                  %299 = vst [vmem:[%s291 + $0xc] sm:%s283] %v298
                  %v300 = vld [vmem:[%s290 + $0x30] sm:%s283]
                  %301 = vst [vmem:[%s291 + $0x10] sm:%s283] %v300
                  %v302 = vld [vmem:[%s290 + $0x3c] sm:%s283]
                  %303 = vst [vmem:[%s291 + $0x14] sm:%s283] %v302
                  %v304 = vld [vmem:[%s290 + $0x48] sm:%s283]
                  %305 = vst [vmem:[%s291 + $0x18] sm:%s283] %v304
                  %v306 = vld [vmem:[%s290 + $0x54] sm:%s283]
                  %307 = vst [vmem:[%s291 + $0x1c] sm:%s283] %v306
                $region79: #{digits_convnet_forward.1} parent=66 // loop_footer
                  %s289 = sadd.s32 1, %s285
                $region80: #{digits_convnet_forward.1} parent=66 // loop_footer_branch
                  %284 = sbr.rel target = $region76
                $region81: #{digits_convnet_forward.1} parent=66 // loop_exit
                  _
              $region67: #{digits_convnet_forward.1} parent=51 // pred_fallthru
                _
            $region52: #{digits_convnet_forward.1} parent=47 // pred_fallthru
              _
            // Predicated region
            $region53: #{digits_convnet_forward.1} parent=47 // pred_check
              _
            $region54: #{digits_convnet_forward.1} parent=47 // pred_check_branch
              %245 = sbr.rel (0) target = $region56
            $region55: #{digits_convnet_forward.1} parent=47 // pred_region
              %s247 = ssub.s32 16, 1
              loop: start=0, step=1, limit=1
              $region57: #{digits_convnet_forward.1} parent=55 // loop_pre_header
                _
              $region58: #{digits_convnet_forward.1} parent=55 // loop_header
                %s249 = sphi 0, %s253
                %p250 = scmp.ge.s32.totalorder %s249, 1
                %s254 = sphi %s239, %s239
                %s255 = sphi %s237, %s237
              $region59: #{digits_convnet_forward.1} parent=55 // loop_header_branch
                %252 = sbr.rel (%p250) target = $region63
              $region60: #{digits_convnet_forward.1} parent=55 // loop_body
                %v256 = vld [vmem:[%s254] sm:%s247]
                %257 = vst [vmem:[%s255] sm:%s247] %v256
                %v258 = vld [vmem:[%s254 + $0xc] sm:%s247]
                %259 = vst [vmem:[%s255 + $0x4] sm:%s247] %v258
                %v260 = vld [vmem:[%s254 + $0x18] sm:%s247]
                %261 = vst [vmem:[%s255 + $0x8] sm:%s247] %v260
                %v262 = vld [vmem:[%s254 + $0x24] sm:%s247]
                %263 = vst [vmem:[%s255 + $0xc] sm:%s247] %v262
                %v264 = vld [vmem:[%s254 + $0x30] sm:%s247]
                %265 = vst [vmem:[%s255 + $0x10] sm:%s247] %v264
                %v266 = vld [vmem:[%s254 + $0x3c] sm:%s247]
                %267 = vst [vmem:[%s255 + $0x14] sm:%s247] %v266
                %v268 = vld [vmem:[%s254 + $0x48] sm:%s247]
                %269 = vst [vmem:[%s255 + $0x18] sm:%s247] %v268
                %v270 = vld [vmem:[%s254 + $0x54] sm:%s247]
                %271 = vst [vmem:[%s255 + $0x1c] sm:%s247] %v270
              $region61: #{digits_convnet_forward.1} parent=55 // loop_footer
                %s253 = sadd.s32 1, %s249
              $region62: #{digits_convnet_forward.1} parent=55 // loop_footer_branch
                %248 = sbr.rel target = $region58
              $region63: #{digits_convnet_forward.1} parent=55 // loop_exit
                _
            $region56: #{digits_convnet_forward.1} parent=47 // pred_fallthru
              _
          $region48: #{digits_convnet_forward.1} parent=43 // pred_fallthru
            _
          %308 = vnop
        $region44: #{digits_convnet_forward.1} parent=39 // pred_fallthru
          _
      $region40: #{digits_convnet_forward.1} parent=5 // pred_fallthru
        _
      %p309 = scmp.le.s32.totalorder 1, %s16
      %p310 = scmp.lt.s32.totalorder %s16, 4
      %p311 = pnand %p309, %p310
      %p312 = pneg %p311
      // Predicated region
      $region82: #{digits_convnet_forward.1} parent=5 // pred_check
        _
      $region83: #{digits_convnet_forward.1} parent=5 // pred_check_branch
        %314 = sbr.rel (%p311) target = $region85
      $region84: #{digits_convnet_forward.1} parent=5 // pred_region
        %s315 = ssub.s32 %s16, 1
        %s316 = sand.u32 %s29, 1
        %s317 = sand.u32 %s29, 1
        %s318 = smul.addr %s317, 32
        %s319 = scalar_lea.vmem [#allocation2], %s318
        // Predicated region
        $region86: #{digits_convnet_forward.1} parent=84 // pred_check
          %p320 = pneg %p42
        $region87: #{digits_convnet_forward.1} parent=84 // pred_check_branch
          %322 = sbr.rel (%p320) target = $region89
        $region88: #{digits_convnet_forward.1} parent=84 // pred_region
          _
        $region89: #{digits_convnet_forward.1} parent=84 // pred_fallthru
          _
        %s323 = sand.u32 %s29, 1
        %s324 = sand.u32 %s29, 1
        %s325 = smul.addr %s324, 32
        %s326 = scalar_lea.vmem [#allocation2], %s325
        %p327 = pneg %p42
        %p328 = pneg %p39
        %p329 = pneg %p63
        %p330 = pneg %p60
        %p331 = pneg %p84
        %p332 = pneg %p81
        %p333 = pneg %p105
        %p334 = pneg %p102
        %p335 = pneg %p126
        %p336 = pneg %p123
        %p337 = pneg %p147
        %p338 = pneg %p144
        %p339 = pneg %p168
        %p340 = pneg %p165
        %p341 = pneg %p194
        %p342 = pneg %p191
        %s343 = sand.u32 %s181, 1
        %s344 = scalar_lea.sflag [#allocation4], %s343
        %s345 = sand.u32 %s181, 1
        %s346 = smul.addr %s345, 16
        %s347 = scalar_lea.vmem [#allocation3], %s346
        %v349 = vld [vmem:[%s1] sm:$0xf]
        %v350 = vld [vmem:[%s1 + $0x4] sm:$0xf]
        %v351 = vld [vmem:[%s1 + $0x8] sm:$0xf]
        %v352 = vld [vmem:[%s1 + $0xc] sm:$0xf]
        %v353 = vld [vmem:[%s1 + $0x10] sm:$0xf]
        %v354 = vld [vmem:[%s1 + $0x14] sm:$0xf]
        %v355 = vld [vmem:[%s1 + $0x18] sm:$0xf]
        %v356 = vld [vmem:[%s1 + $0x1c] sm:$0xf]
        %v357 = vld [vmem:[%s1 + $0x20] sm:$0xf]
        %v358 = vld [vmem:[%s1 + $0x24] sm:$0xf]
        %v359 = vld [vmem:[%s1 + $0x28] sm:$0xf]
        %v360 = vld [vmem:[%s1 + $0x2c] sm:$0xf]
        %v361 = vld [vmem:[%s1 + $0x30] sm:$0xf]
        %v362 = vld [vmem:[%s1 + $0x34] sm:$0xf]
        %v363 = vld [vmem:[%s1 + $0x38] sm:$0xf]
        %v364 = vld [vmem:[%s1 + $0x3c] sm:$0xf]
        %v365 = vld [vmem:[%s1 + $0x40] sm:$0xf]
        %v366 = vld [vmem:[%s1 + $0x44] sm:$0xf]
        %v367 = vld [vmem:[%s1 + $0x48] sm:$0xf]
        %v368 = vld [vmem:[%s1 + $0x4c] sm:$0xf]
        %v369 = vld [vmem:[%s1 + $0x50] sm:$0xf]
        %v370 = vld [vmem:[%s1 + $0x54] sm:$0xf]
        %v371 = vld [vmem:[%s1 + $0x58] sm:$0xf]
        %v372 = vld [vmem:[%s1 + $0x5c] sm:$0xf]
        %v373 = vld [vmem:[%s1 + $0x60] sm:$0xf]
        %v374 = vld [vmem:[%s1 + $0x64] sm:$0xf]
        %v375 = vld [vmem:[%s1 + $0x68] sm:$0xf]
        %v376 = vld [vmem:[%s1 + $0x6c] sm:$0xf]
        %v377 = vld [vmem:[%s1 + $0x70] sm:$0xf]
        %v378 = vld [vmem:[%s1 + $0x74] sm:$0xf]
        %v379 = vld [vmem:[%s1 + $0x78] sm:$0xf]
        %v380 = vld [vmem:[%s1 + $0x7c] sm:$0xf]
        %v381 = vld [vmem:[%s1 + $0x80] sm:$0xf]
        %v382 = vld [vmem:[%s1 + $0x84] sm:$0xf]
        %v383 = vld [vmem:[%s1 + $0x88] sm:$0xf]
        %v384 = vld [vmem:[%s1 + $0x8c] sm:$0xf]
        %v385 = vld [vmem:[%s319] sm:$0xf]
        %v386 = vld [vmem:[%s319 + $0x4] sm:$0xf]
        %v387 = vld [vmem:[%s319 + $0x8] sm:$0xf]
        %v388 = vld [vmem:[%s319 + $0xc] sm:$0xf]
        %v389 = vld [vmem:[%s319 + $0x10] sm:$0xf]
        %v390 = vld [vmem:[%s319 + $0x14] sm:$0xf]
        %v391 = vld [vmem:[%s319 + $0x18] sm:$0xf]
        %v392 = vld [vmem:[%s319 + $0x1c] sm:$0xf]
        %v429 = vunpack.c.l.b16 %v349
        %v430 = vunpack.c.l.b16 %v350
        %v431 = vunpack.c.l.b16 %v351
        %v432 = vunpack.c.l.b16 %v352
        %v433 = vunpack.c.l.b16 %v353
        %v434 = vunpack.c.l.b16 %v354
        %v435 = vunpack.c.l.b16 %v355
        %v436 = vunpack.c.l.b16 %v356
        %v437 = vunpack.c.l.b16 %v357
        %v438 = vunpack.c.l.b16 %v358
        %v439 = vunpack.c.l.b16 %v359
        %v440 = vunpack.c.l.b16 %v360
        %v441 = vunpack.c.l.b16 %v361
        %v442 = vunpack.c.l.b16 %v362
        %v443 = vunpack.c.l.b16 %v363
        %v444 = vunpack.c.l.b16 %v364
        %v445 = vunpack.c.l.b16 %v365
        %v446 = vunpack.c.l.b16 %v366
        %v447 = vunpack.c.l.b16 %v367
        %v448 = vunpack.c.l.b16 %v368
        %v449 = vunpack.c.l.b16 %v369
        %v450 = vunpack.c.l.b16 %v370
        %v451 = vunpack.c.l.b16 %v371
        %v452 = vunpack.c.l.b16 %v372
        %v453 = vunpack.c.l.b16 %v373
        %v454 = vunpack.c.l.b16 %v374
        %v455 = vunpack.c.l.b16 %v375
        %v456 = vunpack.c.l.b16 %v376
        %v457 = vunpack.c.l.b16 %v377
        %v458 = vunpack.c.l.b16 %v378
        %v459 = vunpack.c.l.b16 %v379
        %v460 = vunpack.c.l.b16 %v380
        %v461 = vunpack.c.l.b16 %v381
        %v462 = vunpack.c.l.b16 %v382
        %v463 = vunpack.c.l.b16 %v383
        %v464 = vunpack.c.l.b16 %v384
        %v465 = vpack.c.b16 %v430, %v429
        %v466 = vpack.c.b16 %v432, %v431
        %v467 = vpack.c.b16 %v434, %v433
        %v468 = vpack.c.b16 %v436, %v435
        %v469 = vpack.c.b16 %v438, %v437
        %v470 = vpack.c.b16 %v440, %v439
        %v471 = vpack.c.b16 %v442, %v441
        %v472 = vpack.c.b16 %v444, %v443
        %v473 = vpack.c.b16 %v446, %v445
        %v474 = vpack.c.b16 %v448, %v447
        %v475 = vpack.c.b16 %v450, %v449
        %v476 = vpack.c.b16 %v452, %v451
        %v477 = vpack.c.b16 %v454, %v453
        %v478 = vpack.c.b16 %v456, %v455
        %v479 = vpack.c.b16 %v458, %v457
        %v480 = vpack.c.b16 %v460, %v459
        %v481 = vpack.c.b16 %v462, %v461
        %v482 = vpack.c.b16 %v464, %v463
        %v491 = vunpack.c.l.b16 %v385
        %v492 = vunpack.c.l.b16 %v386
        %v493 = vunpack.c.l.b16 %v387
        %v494 = vunpack.c.l.b16 %v388
        %v495 = vunpack.c.l.b16 %v389
        %v496 = vunpack.c.l.b16 %v390
        %v497 = vunpack.c.l.b16 %v391
        %v498 = vunpack.c.l.b16 %v392
        %v499 = vpack.c.b16 %v492, %v491
        %v500 = vpack.c.b16 %v494, %v493
        %v501 = vpack.c.b16 %v496, %v495
        %v502 = vpack.c.b16 %v498, %v497
        %vm507 = vcmask 523264
        %v509 = vsel %vm507, %v465, 0
        %v512 = vsel %vm507, %v466, 0
        %v515 = vsel %vm507, %v467, 0
        %v518 = vsel %vm507, %v468, 0
        %v521 = vsel %vm507, %v469, 0
        %v524 = vsel %vm507, %v470, 0
        %v527 = vsel %vm507, %v471, 0
        %v530 = vsel %vm507, %v472, 0
        %v533 = vsel %vm507, %v473, 0
        %v536 = vsel %vm507, %v474, 0
        %v539 = vsel %vm507, %v475, 0
        %v542 = vsel %vm507, %v476, 0
        %v545 = vsel %vm507, %v477, 0
        %v548 = vsel %vm507, %v478, 0
        %v551 = vsel %vm507, %v479, 0
        %v554 = vsel %vm507, %v480, 0
        %v557 = vsel %vm507, %v481, 0
        %v560 = vsel %vm507, %v482, 0
        %562 = vmatprep.subr.bf16.mxu0 0
        %563 = vmatpush1.bf16.msra.mxu0 0
        %564 = vmatprep.subr.bf16.mxu0 0
        %565 = vmatpush1.bf16.msra.mxu0 0
        %566 = vmatprep.subr.bf16.mxu0 0
        %567 = vmatpush1.bf16.msra.mxu0 0
        %568 = vmatprep.subr.bf16.mxu0 0
        %569 = vmatpush1.bf16.msra.mxu0 0
        %570 = vmatprep.subr.bf16.mxu0 0
        %571 = vmatpush1.bf16.msra.mxu0 %v502
        %572 = vmatprep.subr.bf16.mxu0 0
        %573 = vmatpush1.bf16.msra.mxu0 %v501
        %574 = vmatprep.subr.bf16.mxu0 0
        %575 = vmatpush1.bf16.msra.mxu0 %v500
        %576 = vmatprep.subr.bf16.mxu0 0
        %577 = vmatpush1.bf16.msra.mxu0 %v499
        %578 = vmatprep.subr.bf16.mxu0 0
        %579 = vmatpush2.bf16.msra.mxu0 0
        %580 = vmatprep.subr.bf16.mxu0 0
        %581 = vmatpush2.bf16.msra.mxu0 0
        %582 = vmatprep.subr.bf16.mxu0 0
        %583 = vmatpush2.bf16.msra.mxu0 0
        %584 = vmatprep.subr.bf16.mxu0 0
        %585 = vmatpush2.bf16.msra.mxu0 0
        %586 = vmatprep.subr.bf16.mxu0 0
        %587 = vmatpush2.bf16.msra.mxu0 0
        %588 = vmatprep.subr.bf16.mxu0 0
        %589 = vmatpush2.bf16.msra.mxu0 0
        %590 = vmatprep.subr.bf16.mxu0 0
        %591 = vmatpush2.bf16.msra.mxu0 0
        %592 = vmatprep.subr.bf16.mxu0 0
        %593 = vmatpush2.bf16.msra.mxu0 0
        %594 = vmatprep.mubr.bf16.mxu0 0
        %595 = vmatmul.mubr.bf16.gmra.mxu0 %v509
        %v596 = vpop.f32.mrf.mxu0
        %v597 = vadd.f32 0.0, %v596
        %v598 = vpop.f32.mrf.mxu0
        %v599 = vpop.f32.mrf.mxu0
        %v600 = vadd.f32 0.0, %v599
        %v601 = vpop.f32.mrf.mxu0
        %602 = vmatprep.mubr.bf16.mxu0 0
        %603 = vmatmul.mubr.bf16.gmra.mxu0 %v512
        %v604 = vpop.f32.mrf.mxu0
        %v605 = vadd.f32 0.0, %v604
        %v606 = vpop.f32.mrf.mxu0
        %v607 = vpop.f32.mrf.mxu0
        %v608 = vadd.f32 0.0, %v607
        %v609 = vpop.f32.mrf.mxu0
        %610 = vmatprep.mubr.bf16.mxu0 0
        %611 = vmatmul.mubr.bf16.gmra.mxu0 %v515
        %v612 = vpop.f32.mrf.mxu0
        %v613 = vadd.f32 0.0, %v612
        %v614 = vpop.f32.mrf.mxu0
        %v615 = vpop.f32.mrf.mxu0
        %v616 = vadd.f32 0.0, %v615
        %v617 = vpop.f32.mrf.mxu0
        %618 = vmatprep.mubr.bf16.mxu0 0
        %619 = vmatmul.mubr.bf16.gmra.mxu0 %v518
        %v620 = vpop.f32.mrf.mxu0
        %v621 = vadd.f32 0.0, %v620
        %v622 = vpop.f32.mrf.mxu0
        %v623 = vpop.f32.mrf.mxu0
        %v624 = vadd.f32 0.0, %v623
        %v625 = vpop.f32.mrf.mxu0
        %626 = vmatprep.mubr.bf16.mxu0 0
        %627 = vmatmul.mubr.bf16.gmra.mxu0 %v521
        %v628 = vpop.f32.mrf.mxu0
        %v629 = vadd.f32 0.0, %v628
        %v630 = vpop.f32.mrf.mxu0
        %v631 = vpop.f32.mrf.mxu0
        %v632 = vadd.f32 0.0, %v631
        %v633 = vpop.f32.mrf.mxu0
        %634 = vmatprep.mubr.bf16.mxu0 0
        %635 = vmatmul.mubr.bf16.gmra.mxu0 %v524
        %v636 = vpop.f32.mrf.mxu0
        %v637 = vadd.f32 0.0, %v636
        %v638 = vpop.f32.mrf.mxu0
        %v639 = vpop.f32.mrf.mxu0
        %v640 = vadd.f32 0.0, %v639
        %v641 = vpop.f32.mrf.mxu0
        %642 = vmatprep.mubr.bf16.mxu0 0
        %643 = vmatmul.mubr.bf16.gmra.mxu0 %v527
        %v644 = vpop.f32.mrf.mxu0
        %v645 = vadd.f32 0.0, %v644
        %v646 = vpop.f32.mrf.mxu0
        %v647 = vpop.f32.mrf.mxu0
        %v648 = vadd.f32 0.0, %v647
        %v649 = vpop.f32.mrf.mxu0
        %650 = vmatprep.mubr.bf16.mxu0 0
        %651 = vmatmul.mubr.bf16.gmra.mxu0 %v530
        %v652 = vpop.f32.mrf.mxu0
        %v653 = vadd.f32 0.0, %v652
        %v654 = vpop.f32.mrf.mxu0
        %v655 = vpop.f32.mrf.mxu0
        %v656 = vadd.f32 0.0, %v655
        %v657 = vpop.f32.mrf.mxu0
        %658 = vmatprep.mubr.bf16.mxu0 0
        %659 = vmatmul.mubr.bf16.gmra.mxu0 %v533
        %v660 = vpop.f32.mrf.mxu0
        %v661 = vadd.f32 0.0, %v660
        %v662 = vpop.f32.mrf.mxu0
        %v663 = vpop.f32.mrf.mxu0
        %v664 = vadd.f32 0.0, %v663
        %v665 = vpop.f32.mrf.mxu0
        %666 = vmatprep.mubr.bf16.mxu0 0
        %667 = vmatmul.mubr.bf16.gmra.mxu0 %v536
        %v668 = vpop.f32.mrf.mxu0
        %v669 = vadd.f32 0.0, %v668
        %v670 = vpop.f32.mrf.mxu0
        %v671 = vpop.f32.mrf.mxu0
        %v672 = vadd.f32 0.0, %v671
        %v673 = vpop.f32.mrf.mxu0
        %674 = vmatprep.mubr.bf16.mxu0 0
        %675 = vmatmul.mubr.bf16.gmra.mxu0 %v539
        %v676 = vpop.f32.mrf.mxu0
        %v677 = vadd.f32 0.0, %v676
        %v678 = vpop.f32.mrf.mxu0
        %v679 = vpop.f32.mrf.mxu0
        %v680 = vadd.f32 0.0, %v679
        %v681 = vpop.f32.mrf.mxu0
        %682 = vmatprep.mubr.bf16.mxu0 0
        %683 = vmatmul.mubr.bf16.gmra.mxu0 %v542
        %v684 = vpop.f32.mrf.mxu0
        %v685 = vadd.f32 0.0, %v684
        %v686 = vpop.f32.mrf.mxu0
        %v687 = vpop.f32.mrf.mxu0
        %v688 = vadd.f32 0.0, %v687
        %v689 = vpop.f32.mrf.mxu0
        %690 = vmatprep.mubr.bf16.mxu0 0
        %691 = vmatmul.mubr.bf16.gmra.mxu0 %v545
        %v692 = vpop.f32.mrf.mxu0
        %v693 = vadd.f32 0.0, %v692
        %v694 = vpop.f32.mrf.mxu0
        %v695 = vpop.f32.mrf.mxu0
        %v696 = vadd.f32 0.0, %v695
        %v697 = vpop.f32.mrf.mxu0
        %698 = vmatprep.mubr.bf16.mxu0 0
        %699 = vmatmul.mubr.bf16.gmra.mxu0 %v548
        %v700 = vpop.f32.mrf.mxu0
        %v701 = vadd.f32 0.0, %v700
        %v702 = vpop.f32.mrf.mxu0
        %v703 = vpop.f32.mrf.mxu0
        %v704 = vadd.f32 0.0, %v703
        %v705 = vpop.f32.mrf.mxu0
        %706 = vmatprep.mubr.bf16.mxu0 0
        %707 = vmatmul.mubr.bf16.gmra.mxu0 %v551
        %v708 = vpop.f32.mrf.mxu0
        %v709 = vadd.f32 0.0, %v708
        %v710 = vpop.f32.mrf.mxu0
        %v711 = vpop.f32.mrf.mxu0
        %v712 = vadd.f32 0.0, %v711
        %v713 = vpop.f32.mrf.mxu0
        %714 = vmatprep.mubr.bf16.mxu0 0
        %715 = vmatmul.mubr.bf16.gmra.mxu0 %v554
        %v716 = vpop.f32.mrf.mxu0
        %v717 = vadd.f32 0.0, %v716
        %v718 = vpop.f32.mrf.mxu0
        %v719 = vpop.f32.mrf.mxu0
        %v720 = vadd.f32 0.0, %v719
        %v721 = vpop.f32.mrf.mxu0
        %722 = vmatprep.mubr.bf16.mxu0 0
        %723 = vmatmul.mubr.bf16.gmra.mxu0 %v557
        %v724 = vpop.f32.mrf.mxu0
        %v725 = vadd.f32 0.0, %v724
        %v726 = vpop.f32.mrf.mxu0
        %v727 = vpop.f32.mrf.mxu0
        %v728 = vadd.f32 0.0, %v727
        %v729 = vpop.f32.mrf.mxu0
        %730 = vmatprep.mubr.bf16.mxu0 0
        %731 = vmatmul.mubr.bf16.gmra.mxu0 %v560
        %v732 = vpop.f32.mrf.mxu0
        %v733 = vadd.f32 0.0, %v732
        %v734 = vpop.f32.mrf.mxu0
        %v735 = vpop.f32.mrf.mxu0
        %v736 = vadd.f32 0.0, %v735
        %v737 = vpop.f32.mrf.mxu0
        %738 = vdwg.mxu0
        %v739 = vmax.f32 %v597, %v632
        %v740 = vmax.f32 %v600, %v637
        %v741 = vmax.f32 %v605, %v640
        %v742 = vmax.f32 %v608, %v645
        %v743 = vmax.f32 %v613, %v648
        %v744 = vmax.f32 %v616, %v653
        %v745 = vmax.f32 %v621, %v656
        %v746 = vmax.f32 %v624, %v661
        %v747 = vmax.f32 %v629, %v664
        %v748 = vmax.f32 %v669, %v704
        %v749 = vmax.f32 %v672, %v709
        %v750 = vmax.f32 %v677, %v712
        %v751 = vmax.f32 %v680, %v717
        %v752 = vmax.f32 %v685, %v720
        %v753 = vmax.f32 %v688, %v725
        %v754 = vmax.f32 %v693, %v728
        %v755 = vmax.f32 %v696, %v733
        %v756 = vmax.f32 %v701, %v736
        %v757 = vmax.f32 %v739, %v748
        %v758 = vmax.f32 %v740, %v749
        %v759 = vmax.f32 %v741, %v750
        %v760 = vmax.f32 %v742, %v751
        %v761 = vmax.f32 %v743, %v752
        %v762 = vmax.f32 %v744, %v753
        %v763 = vmax.f32 %v745, %v754
        %v764 = vmax.f32 %v746, %v755
        %v765 = vmax.f32 %v747, %v756
        %v766 = vld [vmem:[%s2] sm:$0xff]
        %v767 = vld [vmem:[%s2 + $0x8] sm:$0xff]
        %v768 = vld [vmem:[%s2 + $0x10] sm:$0xff]
        %v769 = vld [vmem:[%s2 + $0x18] sm:$0xff]
        %v770 = vld [vmem:[%s2 + $0x20] sm:$0xff]
        %v771 = vld [vmem:[%s2 + $0x28] sm:$0xff]
        %v772 = vld [vmem:[%s2 + $0x30] sm:$0xff]
        %v773 = vld [vmem:[%s2 + $0x38] sm:$0xff]
        %v774 = vld [vmem:[%s2 + $0x40] sm:$0xff]
        %776 = vset.pattern.permute.xlu0 0
        %777 = vperm.xlu0 %776, %v766
        %v778 = vpop.permute.xlu0 %777
        %781 = vset.pattern.permute.xlu0 0
        %782 = vperm.xlu0 %781, %v767
        %v783 = vpop.permute.xlu0 %782
        %786 = vset.pattern.permute.xlu0 0
        %787 = vperm.xlu0 %786, %v768
        %v788 = vpop.permute.xlu0 %787
        %791 = vset.pattern.permute.xlu0 0
        %792 = vperm.xlu0 %791, %v769
        %v793 = vpop.permute.xlu0 %792
        %796 = vset.pattern.permute.xlu0 0
        %797 = vperm.xlu0 %796, %v770
        %v798 = vpop.permute.xlu0 %797
        %801 = vset.pattern.permute.xlu0 0
        %802 = vperm.xlu0 %801, %v771
        %v803 = vpop.permute.xlu0 %802
        %806 = vset.pattern.permute.xlu0 0
        %807 = vperm.xlu0 %806, %v772
        %v808 = vpop.permute.xlu0 %807
        %811 = vset.pattern.permute.xlu0 0
        %812 = vperm.xlu0 %811, %v773
        %v813 = vpop.permute.xlu0 %812
        %816 = vset.pattern.permute.xlu0 0
        %817 = vperm.xlu0 %816, %v774
        %v818 = vpop.permute.xlu0 %817
        %v820 = vadd.f32 %v757, %v778
        %v821 = vadd.f32 %v758, %v783
        %v822 = vadd.f32 %v759, %v788
        %v823 = vadd.f32 %v760, %v793
        %v824 = vadd.f32 %v761, %v798
        %v825 = vadd.f32 %v762, %v803
        %v826 = vadd.f32 %v763, %v808
        %v827 = vadd.f32 %v764, %v813
        %v828 = vadd.f32 %v765, %v818
        %v829 = vmax.f32 %v820, 0.0
        %v830 = vmax.f32 %v821, 0.0
        %v831 = vmax.f32 %v822, 0.0
        %v832 = vmax.f32 %v823, 0.0
        %v833 = vmax.f32 %v824, 0.0
        %v834 = vmax.f32 %v825, 0.0
        %v835 = vmax.f32 %v826, 0.0
        %v836 = vmax.f32 %v827, 0.0
        %v837 = vmax.f32 %v828, 0.0
        %v838 = vld [vmem:[%s3] sm:$0xf]
        %v839 = vld [vmem:[%s4] sm:$0xf]
        %841 = vset.pattern.permute.xlu0 0
        %842 = vperm.xlu0 %841, %v839
        %v843 = vpop.permute.xlu0 %842
        %vm845 = vcmask 588800
        %v847 = vsel %vm845, %v838, 0
        %849 = vmatprep.subr.mxu0 0.0
        %850 = vmatpush1.msra.mxu0 0.0
        %851 = vmatprep.subr.mxu0 0.0
        %852 = vmatpush1.msra.mxu0 0.0
        %853 = vmatprep.subr.mxu0 0.0
        %854 = vmatpush1.msra.mxu0 0.0
        %855 = vmatprep.subr.mxu0 0.0
        %856 = vmatpush1.msra.mxu0 0.0
        %857 = vmatprep.subr.mxu0 0.0
        %858 = vmatpush1.msra.mxu0 0.0
        %859 = vmatprep.subr.mxu0 0.0
        %860 = vmatpush1.msra.mxu0 0.0
        %861 = vmatprep.subr.mxu0 0.0
        %862 = vmatpush1.msra.mxu0 0.0
        %863 = vmatprep.subr.mxu0 0.0
        %864 = vmatpush1.msra.mxu0 %v837
        %865 = vmatprep.subr.mxu0 0.0
        %866 = vmatpush1.msra.mxu0 %v836
        %867 = vmatprep.subr.mxu0 0.0
        %868 = vmatpush1.msra.mxu0 %v835
        %869 = vmatprep.subr.mxu0 0.0
        %870 = vmatpush1.msra.mxu0 %v834
        %871 = vmatprep.subr.mxu0 0.0
        %872 = vmatpush1.msra.mxu0 %v833
        %873 = vmatprep.subr.mxu0 0.0
        %874 = vmatpush1.msra.mxu0 %v832
        %875 = vmatprep.subr.mxu0 0.0
        %876 = vmatpush1.msra.mxu0 %v831
        %877 = vmatprep.subr.mxu0 0.0
        %878 = vmatpush1.msra.mxu0 %v830
        %879 = vmatprep.subr.mxu0 0.0
        %880 = vmatpush1.msra.mxu0 %v829
        %881 = vmatprep.subr.mxu0 0.0
        %882 = vmatpush2.msra.mxu0 0.0
        %883 = vmatprep.subr.mxu0 0.0
        %884 = vmatpush2.msra.mxu0 0.0
        %885 = vmatprep.subr.mxu0 0.0
        %886 = vmatpush2.msra.mxu0 0.0
        %887 = vmatprep.subr.mxu0 0.0
        %888 = vmatpush2.msra.mxu0 0.0
        %889 = vmatprep.subr.mxu0 0.0
        %890 = vmatpush2.msra.mxu0 0.0
        %891 = vmatprep.subr.mxu0 0.0
        %892 = vmatpush2.msra.mxu0 0.0
        %893 = vmatprep.subr.mxu0 0.0
        %894 = vmatpush2.msra.mxu0 0.0
        %895 = vmatprep.subr.mxu0 0.0
        %896 = vmatpush2.msra.mxu0 0.0
        %897 = vmatprep.subr.mxu0 0.0
        %898 = vmatpush2.msra.mxu0 0.0
        %899 = vmatprep.subr.mxu0 0.0
        %900 = vmatpush2.msra.mxu0 0.0
        %901 = vmatprep.subr.mxu0 0.0
        %902 = vmatpush2.msra.mxu0 0.0
        %903 = vmatprep.subr.mxu0 0.0
        %904 = vmatpush2.msra.mxu0 0.0
        %905 = vmatprep.subr.mxu0 0.0
        %906 = vmatpush2.msra.mxu0 0.0
        %907 = vmatprep.subr.mxu0 0.0
        %908 = vmatpush2.msra.mxu0 0.0
        %909 = vmatprep.subr.mxu0 0.0
        %910 = vmatpush2.msra.mxu0 0.0
        %911 = vmatprep.subr.mxu0 0.0
        %912 = vmatpush2.msra.mxu0 0.0
        %913 = vmatprep.mubr.f32.mxu0 0.0
        %914 = vmatmul.mubr.f32.gmra.mxu0 %v847
        %v915 = vpop.f32.mrf.mxu0
        %v916 = vadd.f32 %v843, %v915
        %v917 = vpop.f32.mrf.mxu0
        %918 = vdwg.mxu0
        %v919 = vmax.f32 %v916, 0.0
        %v920 = vld [vmem:[%s5] sm:$0xff]
        %v921 = vld [vmem:[%s5 + $0x8] sm:$0x3]
        %v922 = vld [vmem:[%s6] sm:$0xff]
        %v923 = vld [vmem:[%s6 + $0x8] sm:$0x3]
        %925 = vset.pattern.permute.xlu0 0
        %926 = vperm.xlu0 %925, %v922
        %v927 = vpop.permute.xlu0 %926
        %930 = vset.pattern.permute.xlu0 0
        %931 = vperm.xlu0 %930, %v923
        %v932 = vpop.permute.xlu0 %931
        %vm934 = vcmask 31744
        %v936 = vsel %vm934, %v920, 0
        %v939 = vsel %vm934, %v921, 0
        %vm941 = vcmask 1043456
        %v943 = vsel %vm941, %v919, 0
        %945 = vmatprep.subr.mxu0 0.0
        %946 = vmatpush1.msra.mxu0 0.0
        %947 = vmatprep.subr.mxu0 0.0
        %948 = vmatpush1.msra.mxu0 0.0
        %949 = vmatprep.subr.mxu0 0.0
        %950 = vmatpush1.msra.mxu0 0.0
        %951 = vmatprep.subr.mxu0 0.0
        %952 = vmatpush1.msra.mxu0 0.0
        %953 = vmatprep.subr.mxu0 0.0
        %954 = vmatpush1.msra.mxu0 0.0
        %955 = vmatprep.subr.mxu0 0.0
        %956 = vmatpush1.msra.mxu0 0.0
        %957 = vmatprep.subr.mxu0 0.0
        %958 = vmatpush1.msra.mxu0 0.0
        %959 = vmatprep.subr.mxu0 0.0
        %960 = vmatpush1.msra.mxu0 0.0
        %961 = vmatprep.subr.mxu0 0.0
        %962 = vmatpush1.msra.mxu0 0.0
        %963 = vmatprep.subr.mxu0 0.0
        %964 = vmatpush1.msra.mxu0 0.0
        %965 = vmatprep.subr.mxu0 0.0
        %966 = vmatpush1.msra.mxu0 0.0
        %967 = vmatprep.subr.mxu0 0.0
        %968 = vmatpush1.msra.mxu0 0.0
        %969 = vmatprep.subr.mxu0 0.0
        %970 = vmatpush1.msra.mxu0 0.0
        %971 = vmatprep.subr.mxu0 0.0
        %972 = vmatpush1.msra.mxu0 0.0
        %973 = vmatprep.subr.mxu0 0.0
        %974 = vmatpush1.msra.mxu0 0.0
        %975 = vmatprep.subr.mxu0 0.0
        %976 = vmatpush1.msra.mxu0 %v943
        %977 = vmatprep.subr.mxu0 0.0
        %978 = vmatpush2.msra.mxu0 0.0
        %979 = vmatprep.subr.mxu0 0.0
        %980 = vmatpush2.msra.mxu0 0.0
        %981 = vmatprep.subr.mxu0 0.0
        %982 = vmatpush2.msra.mxu0 0.0
        %983 = vmatprep.subr.mxu0 0.0
        %984 = vmatpush2.msra.mxu0 0.0
        %985 = vmatprep.subr.mxu0 0.0
        %986 = vmatpush2.msra.mxu0 0.0
        %987 = vmatprep.subr.mxu0 0.0
        %988 = vmatpush2.msra.mxu0 0.0
        %989 = vmatprep.subr.mxu0 0.0
        %990 = vmatpush2.msra.mxu0 0.0
        %991 = vmatprep.subr.mxu0 0.0
        %992 = vmatpush2.msra.mxu0 0.0
        %993 = vmatprep.subr.mxu0 0.0
        %994 = vmatpush2.msra.mxu0 0.0
        %995 = vmatprep.subr.mxu0 0.0
        %996 = vmatpush2.msra.mxu0 0.0
        %997 = vmatprep.subr.mxu0 0.0
        %998 = vmatpush2.msra.mxu0 0.0
        %999 = vmatprep.subr.mxu0 0.0
        %1000 = vmatpush2.msra.mxu0 0.0
        %1001 = vmatprep.subr.mxu0 0.0
        %1002 = vmatpush2.msra.mxu0 0.0
        %1003 = vmatprep.subr.mxu0 0.0
        %1004 = vmatpush2.msra.mxu0 0.0
        %1005 = vmatprep.subr.mxu0 0.0
        %1006 = vmatpush2.msra.mxu0 0.0
        %1007 = vmatprep.subr.mxu0 0.0
        %1008 = vmatpush2.msra.mxu0 0.0
        %1009 = vmatprep.mubr.f32.mxu0 0.0
        %1010 = vmatmul.mubr.f32.gmra.mxu0 %v936
        %v1011 = vpop.f32.mrf.mxu0
        %v1012 = vadd.f32 %v927, %v1011
        %v1013 = vpop.f32.mrf.mxu0
        %1014 = vmatprep.mubr.f32.mxu0 0.0
        %1015 = vmatmul.mubr.f32.gmra.mxu0 %v939
        %v1016 = vpop.f32.mrf.mxu0
        %v1017 = vadd.f32 %v932, %v1016
        %v1018 = vpop.f32.mrf.mxu0
        %1019 = vdwg.mxu0
        %1020 = vst [vmem:[%s347] sm:$0xff] %v1012
        %1021 = vst [vmem:[%s347 + $0x8] sm:$0x3] %v1017
        %s1022 = sand.u32 %s181, 1
        %s1023 = scalar_lea.sflag [#allocation4], %s1022
        %s1024 = sand.u32 %s181, 1
        %s1025 = smul.addr %s1024, 16
        %s1026 = scalar_lea.vmem [#allocation3], %s1025
        // Predicated region
        $region90: #{digits_convnet_forward.1} parent=84 // pred_check
          %p1027 = pneg %p191
        $region91: #{digits_convnet_forward.1} parent=84 // pred_check_branch
          %1029 = sbr.rel (%p1027) target = $region93
        $region92: #{digits_convnet_forward.1} parent=84 // pred_region
          %s1031 = ssub.s32 256, 256
          %1032 = vsyncadd %s1023, %s1031
          %s1033 = smul.addr %s21, 128
          %s1034 = scalar_lea.hbm %s7, %s1033
          %s1035 = sshll.u32 %s1026, 4
          %s1036 = int_to_ptr.vmem [resolvable:$true] %s1035
          %1041 = dma.vmem_to_hbm [thread:$0]  %s1036, 256, %s1034, %s1023, 128, 384, 8
        $region93: #{digits_convnet_forward.1} parent=84 // pred_fallthru
          _
      $region85: #{digits_convnet_forward.1} parent=5 // pred_fallthru
        _
      %p1042 = scmp.le.s32.totalorder 2, %s16
      // Predicated region
      $region94: #{digits_convnet_forward.1} parent=5 // pred_check
        %p1043 = pneg %p1042
      $region95: #{digits_convnet_forward.1} parent=5 // pred_check_branch
        %1045 = sbr.rel (%p1043) target = $region97
      $region96: #{digits_convnet_forward.1} parent=5 // pred_region
        %s1046 = ssub.s32 %s16, 2
        // Predicated region
        $region98: #{digits_convnet_forward.1} parent=96 // pred_check
          %p1047 = pneg %p197
        $region99: #{digits_convnet_forward.1} parent=96 // pred_check_branch
          %1049 = sbr.rel (%p1047) target = $region101
        $region100: #{digits_convnet_forward.1} parent=96 // pred_region
          %s1050 = sand.u32 %s182, 1
          %s1051 = scalar_lea.sflag [#allocation4], %s1050
          %s1052 = sand.u32 %s182, 1
          %s1053 = smul.addr %s1052, 16
          %s1054 = scalar_lea.vmem [#allocation3], %s1053
          %1055 = dma.done %s1051, 256
        $region101: #{digits_convnet_forward.1} parent=96 // pred_fallthru
          _
      $region97: #{digits_convnet_forward.1} parent=5 // pred_fallthru
        _
    $region6: #{digits_convnet_forward.1} parent=1 // loop_footer
      %s20 = sadd.s32 1, %s16
    $region7: #{digits_convnet_forward.1} parent=1 // loop_footer_branch
      %15 = sbr.rel target = $region3
    $region8: #{digits_convnet_forward.1} parent=1 // loop_exit
      _
    %1056 = vsyncpa [#allocation4], 1
    %s1057 = scalar_lea.sflag [#allocation4], 1
    %1058 = vsyncpa %s1057, 1

</llo_original>
